<compile_context>
chip_gen: v7x
topology: tpu7x:2x2x1
jax: 0.10.0
libtpu: 0.0.40
codegen_flags: <defaults>
</compile_context>

<pallas_src>
import jax
import jax.numpy as jnp
from jax.experimental import pallas as pl
from jax.experimental.pallas import tpu as pltpu

HIDDEN = 256
MIN_TILE = 8  # sublane granularity for the batch axis


def tdcritic_kernel(sa_ref,
                    w1_ref, b1_ref, w2_ref, b2_ref, w3r_ref,
                    w4_ref, b4_ref, w5_ref, b5_ref, w6r_ref,
                    b36_ref, q_ref):
    """One batch tile of the two-head TD-critic MLP."""
    sa = sa_ref[...]                                   # bf16 [TB, D]

    # ---- head 1 ------------------------------------------------------------
    h1 = jnp.dot(sa, w1_ref[...], preferred_element_type=jnp.float32)
    h1 = jnp.maximum(h1 + b1_ref[...], 0.0).astype(jnp.bfloat16)
    g1 = jnp.dot(h1, w2_ref[...], preferred_element_type=jnp.float32)
    g1 = jnp.maximum(g1 + b2_ref[...], 0.0)            # f32 [TB, 256]

    # ---- head 2 ------------------------------------------------------------
    h2 = jnp.dot(sa, w4_ref[...], preferred_element_type=jnp.float32)
    h2 = jnp.maximum(h2 + b4_ref[...], 0.0).astype(jnp.bfloat16)
    g2 = jnp.dot(h2, w5_ref[...], preferred_element_type=jnp.float32)
    g2 = jnp.maximum(g2 + b5_ref[...], 0.0)            # f32 [TB, 256]

    # ---- final N=1 projections on VPU + XLU (f32; frees the MXU) -----------
    q1 = jnp.sum(g1 * w3r_ref[...], axis=-1, keepdims=True)   # [TB, 1]
    q2 = jnp.sum(g2 * w6r_ref[...], axis=-1, keepdims=True)   # [TB, 1]

    q = jnp.concatenate([q1, q2], axis=-1) + b36_ref[...]     # [TB, 2]
    q_ref[...] = q.astype(q_ref.dtype)


def _const_spec(shape):
    # Whole-array block, same block for every grid step -> stays VMEM-resident.
    return pl.BlockSpec(shape, lambda i, _n=len(shape): (0,) * _n)


def _round_up(x, m):
    return (x + m - 1) // m * m


def _select_tile(batch, block_b):
    """Batch tile: big enough to amortize per-step overhead, but >=2 grid steps
    when the batch can be split so v7x's two TensorCores both get work."""
    tb = min(block_b, _round_up(max(batch, 1), MIN_TILE))
    if batch >= 2 * MIN_TILE:
        tb = min(tb, _round_up(-(-batch // 2), MIN_TILE))
    return tb


def tdcritic_forward(state, action, fused_params, *, block_b=1024):
    """Pallas equivalent of TDCritic.forward(state, action) -> (q1, q2)."""
    B = state.shape[0]
    D = state.shape[1] + action.shape[1]

    # Single concatenated bf16 input (cheap host-side fusion; one dense DMA).
    sa = jnp.concatenate([state, action], axis=1).astype(jnp.bfloat16)

    tb = _select_tile(B, block_b)
    b_pad = _round_up(B, tb)
    if b_pad != B:
        # Padded rows produce garbage q values; they are sliced off below and
        # must never be consumed downstream.
        sa = jnp.pad(sa, ((0, b_pad - B), (0, 0)))

    weight_args = fused_params

    q = pl.pallas_call(
        tdcritic_kernel,
        out_shape=jax.ShapeDtypeStruct((b_pad, 2), jnp.float32),
        grid=(b_pad // tb,),
        in_specs=[pl.BlockSpec((tb, D), lambda i: (i, 0))]
                 + [_const_spec(w.shape) for w in weight_args],
        out_specs=pl.BlockSpec((tb, 2), lambda i: (i, 0)),
        compiler_params=pltpu.CompilerParams(
            dimension_semantics=("parallel",),   # v7x: shard batch over both TCs
            vmem_limit_bytes=16 << 20,
        ),
    )(sa, *weight_args)

    q = q[:B]
    return q[:, 0:1], q[:, 1:2]


def init_params(key, state_dim, action_dim, hidden=HIDDEN):
    """PyTorch-equivalent Linear params, stored transposed: w [in, out], b [1, out]."""
    in_dim = state_dim + action_dim
    dims = [
        (in_dim, hidden), (hidden, hidden), (hidden, 1),   # l1, l2, l3
        (in_dim, hidden), (hidden, hidden), (hidden, 1),   # l4, l5, l6
    ]
    params = []
    for fan_in, fan_out in dims:
        key, kw, kb = jax.random.split(key, 3)
        bound = 1.0 / jnp.sqrt(jnp.float32(fan_in))
        w = jax.random.uniform(kw, (fan_in, fan_out), jnp.float32, -bound, bound)
        b = jax.random.uniform(kb, (1, fan_out), jnp.float32, -bound, bound)
        params += [w, b]
    return tuple(params)


def fuse_params(params, weight_dtype=jnp.bfloat16):
    """Kernel parameter set: bf16 matmul weights, f32 biases, f32 row-vectors
    for the VPU final projections, fused [1,2] final bias."""
    (w1, b1, w2, b2, w3, b3, w4, b4, w5, b5, w6, b6) = params
    w3r = w3.reshape(1, -1).astype(jnp.float32)   # [1, 256] f32 (VPU path)
    w6r = w6.reshape(1, -1).astype(jnp.float32)   # [1, 256] f32
    b36 = jnp.concatenate([b3, b6], axis=1)       # [1, 2]
    return (w1.astype(weight_dtype), b1,
            w2.astype(weight_dtype), b2,
            w3r,
            w4.astype(weight_dtype), b4,
            w5.astype(weight_dtype), b5,
            w6r,
            b36)


def tdcritic_ref(state, action, params, weight_dtype=jnp.bfloat16):
    """Pure-JAX mirror of TDCritic.forward, modeling the kernel's bf16 casts
    (bf16 inputs / layer-1 activations / matmul weights, f32 accumulation,
    f32 final projections)."""
    def rw(w):  # weight rounding as stored for the MXU
        return w.astype(weight_dtype).astype(jnp.float32)

    def ra(x):  # activation rounding as fed to the MXU
        return x.astype(jnp.bfloat16).astype(jnp.float32)

    (w1, b1, w2, b2, w3, b3, w4, b4, w5, b5, w6, b6) = params
    sa = ra(jnp.concatenate([state, action], axis=1))
    h1 = jnp.maximum(sa @ rw(w1) + b1, 0.0)
    g1 = jnp.maximum(ra(h1) @ rw(w2) + b2, 0.0)
    q1 = g1 @ w3 + b3
    h2 = jnp.maximum(sa @ rw(w4) + b4, 0.0)
    g2 = jnp.maximum(ra(h2) @ rw(w5) + b5, 0.0)
    q2 = g2 @ w6 + b6
    return q1, q2


if __name__ == "__main__":
    key = jax.random.PRNGKey(0)
    B, state_dim, action_dim = 8, 12, 4

    k_state, k_action, k_params = jax.random.split(key, 3)
    state = jax.random.normal(k_state, (B, state_dim), jnp.float32)
    action = jax.random.normal(k_action, (B, action_dim), jnp.float32)
    params = init_params(k_params, state_dim, action_dim)
    fused = fuse_params(params)

    q1, q2 = tdcritic_forward(state, action, fused)
    q1 = jax.block_until_ready(q1)
    q2 = jax.block_until_ready(q2)

    r1, r2 = tdcritic_ref(state, action, params)
    assert q1.shape == (B, 1) and q2.shape == (B, 1)
    # bf16 inputs/layer-1 activations in both kernel and reference; residual
    # difference is only accumulation order -> tight-ish tolerance.
    assert jnp.allclose(q1, r1, atol=2e-2, rtol=2e-2)
    assert jnp.allclose(q2, r2, atol=2e-2, rtol=2e-2)

    print("KERNEL_OK")
</pallas_src>

<mosaic_0001>
module attributes {stable_mosaic.version = 11 : i64} {
  func.func @tdcritic_kernel(%arg0: i32, %arg1: memref<8x16xbf16, #tpu.memory_space<vmem>>, %arg2: memref<16x256xbf16, #tpu.memory_space<vmem>>, %arg3: memref<1x256xf32, #tpu.memory_space<vmem>>, %arg4: memref<256x256xbf16, #tpu.memory_space<vmem>>, %arg5: memref<1x256xf32, #tpu.memory_space<vmem>>, %arg6: memref<1x256xf32, #tpu.memory_space<vmem>>, %arg7: memref<16x256xbf16, #tpu.memory_space<vmem>>, %arg8: memref<1x256xf32, #tpu.memory_space<vmem>>, %arg9: memref<256x256xbf16, #tpu.memory_space<vmem>>, %arg10: memref<1x256xf32, #tpu.memory_space<vmem>>, %arg11: memref<1x256xf32, #tpu.memory_space<vmem>>, %arg12: memref<1x2xf32, #tpu.memory_space<vmem>>, %arg13: memref<8x2xf32, #tpu.memory_space<vmem>>) attributes {dimension_semantics = [#tpu.dimension_semantics<parallel>], iteration_bounds = array<i64: 1>, scalar_prefetch = 0 : i64, scratch_operands = 0 : i64, tpu.core_type = #tpu.core_type<tc>, window_params = [{transform_indices = @transform_0, window_bounds = array<i64: 8, 16>}, {pipeline_mode = #tpu.pipeline_mode<synchronous>, transform_indices = @transform_1, window_bounds = array<i64: 16, 256>}, {pipeline_mode = #tpu.pipeline_mode<synchronous>, transform_indices = @transform_2, window_bounds = array<i64: 1, 256>}, {pipeline_mode = #tpu.pipeline_mode<synchronous>, transform_indices = @transform_3, window_bounds = array<i64: 256, 256>}, {pipeline_mode = #tpu.pipeline_mode<synchronous>, transform_indices = @transform_4, window_bounds = array<i64: 1, 256>}, {pipeline_mode = #tpu.pipeline_mode<synchronous>, transform_indices = @transform_5, window_bounds = array<i64: 1, 256>}, {pipeline_mode = #tpu.pipeline_mode<synchronous>, transform_indices = @transform_6, window_bounds = array<i64: 16, 256>}, {pipeline_mode = #tpu.pipeline_mode<synchronous>, transform_indices = @transform_7, window_bounds = array<i64: 1, 256>}, {pipeline_mode = #tpu.pipeline_mode<synchronous>, transform_indices = @transform_8, window_bounds = array<i64: 256, 256>}, {pipeline_mode = #tpu.pipeline_mode<synchronous>, transform_indices = @transform_9, window_bounds = array<i64: 1, 256>}, {pipeline_mode = #tpu.pipeline_mode<synchronous>, transform_indices = @transform_10, window_bounds = array<i64: 1, 256>}, {pipeline_mode = #tpu.pipeline_mode<synchronous>, transform_indices = @transform_11, window_bounds = array<i64: 1, 2>}, {transform_indices = @transform_12, window_bounds = array<i64: 8, 2>}]} {
    %c0 = arith.constant 0 : index
    %c0_0 = arith.constant 0 : index
    %0 = vector.load %arg1[%c0, %c0_0] : memref<8x16xbf16, #tpu.memory_space<vmem>>, vector<8x16xbf16>
    %c0_1 = arith.constant 0 : index
    %c0_2 = arith.constant 0 : index
    %1 = vector.load %arg2[%c0_1, %c0_2] : memref<16x256xbf16, #tpu.memory_space<vmem>>, vector<16x256xbf16>
    %cst = arith.constant dense<0.000000e+00> : vector<8x256xf32>
    %2 = tpu.matmul %0, %1, %cst {dimension_numbers = #tpu.dot_dimension_numbers<[1], [0], [0], [1], [0, 0, 1, 1], [], []>} : vector<8x16xbf16>, vector<16x256xbf16>, vector<8x256xf32> -> vector<8x256xf32>
    %c0_3 = arith.constant 0 : index
    %c0_4 = arith.constant 0 : index
    %3 = vector.load %arg3[%c0_3, %c0_4] : memref<1x256xf32, #tpu.memory_space<vmem>>, vector<1x256xf32>
    %4 = vector.broadcast %3 : vector<1x256xf32> to vector<8x256xf32>
    %5 = arith.addf %2, %4 : vector<8x256xf32>
    %cst_5 = arith.constant 0.000000e+00 : f32
    %6 = vector.broadcast %cst_5 : f32 to vector<8x256xf32>
    %7 = arith.maximumf %5, %6 : vector<8x256xf32>
    %8 = arith.truncf %7 : vector<8x256xf32> to vector<8x256xbf16>
    %c0_6 = arith.constant 0 : index
    %c0_7 = arith.constant 0 : index
    %9 = vector.load %arg4[%c0_6, %c0_7] : memref<256x256xbf16, #tpu.memory_space<vmem>>, vector<256x256xbf16>
    %cst_8 = arith.constant dense<0.000000e+00> : vector<8x256xf32>
    %10 = tpu.matmul %8, %9, %cst_8 {dimension_numbers = #tpu.dot_dimension_numbers<[1], [0], [0], [1], [0, 0, 1, 1], [], []>} : vector<8x256xbf16>, vector<256x256xbf16>, vector<8x256xf32> -> vector<8x256xf32>
    %c0_9 = arith.constant 0 : index
    %c0_10 = arith.constant 0 : index
    %11 = vector.load %arg5[%c0_9, %c0_10] : memref<1x256xf32, #tpu.memory_space<vmem>>, vector<1x256xf32>
    %12 = vector.broadcast %11 : vector<1x256xf32> to vector<8x256xf32>
    %13 = arith.addf %10, %12 : vector<8x256xf32>
    %cst_11 = arith.constant 0.000000e+00 : f32
    %14 = vector.broadcast %cst_11 : f32 to vector<8x256xf32>
    %15 = arith.maximumf %13, %14 : vector<8x256xf32>
    %c0_12 = arith.constant 0 : index
    %c0_13 = arith.constant 0 : index
    %16 = vector.load %arg7[%c0_12, %c0_13] : memref<16x256xbf16, #tpu.memory_space<vmem>>, vector<16x256xbf16>
    %cst_14 = arith.constant dense<0.000000e+00> : vector<8x256xf32>
    %17 = tpu.matmul %0, %16, %cst_14 {dimension_numbers = #tpu.dot_dimension_numbers<[1], [0], [0], [1], [0, 0, 1, 1], [], []>} : vector<8x16xbf16>, vector<16x256xbf16>, vector<8x256xf32> -> vector<8x256xf32>
    %c0_15 = arith.constant 0 : index
    %c0_16 = arith.constant 0 : index
    %18 = vector.load %arg8[%c0_15, %c0_16] : memref<1x256xf32, #tpu.memory_space<vmem>>, vector<1x256xf32>
    %19 = vector.broadcast %18 : vector<1x256xf32> to vector<8x256xf32>
    %20 = arith.addf %17, %19 : vector<8x256xf32>
    %cst_17 = arith.constant 0.000000e+00 : f32
    %21 = vector.broadcast %cst_17 : f32 to vector<8x256xf32>
    %22 = arith.maximumf %20, %21 : vector<8x256xf32>
    %23 = arith.truncf %22 : vector<8x256xf32> to vector<8x256xbf16>
    %c0_18 = arith.constant 0 : index
    %c0_19 = arith.constant 0 : index
    %24 = vector.load %arg9[%c0_18, %c0_19] : memref<256x256xbf16, #tpu.memory_space<vmem>>, vector<256x256xbf16>
    %cst_20 = arith.constant dense<0.000000e+00> : vector<8x256xf32>
    %25 = tpu.matmul %23, %24, %cst_20 {dimension_numbers = #tpu.dot_dimension_numbers<[1], [0], [0], [1], [0, 0, 1, 1], [], []>} : vector<8x256xbf16>, vector<256x256xbf16>, vector<8x256xf32> -> vector<8x256xf32>
    %c0_21 = arith.constant 0 : index
    %c0_22 = arith.constant 0 : index
    %26 = vector.load %arg10[%c0_21, %c0_22] : memref<1x256xf32, #tpu.memory_space<vmem>>, vector<1x256xf32>
    %27 = vector.broadcast %26 : vector<1x256xf32> to vector<8x256xf32>
    %28 = arith.addf %25, %27 : vector<8x256xf32>
    %cst_23 = arith.constant 0.000000e+00 : f32
    %29 = vector.broadcast %cst_23 : f32 to vector<8x256xf32>
    %30 = arith.maximumf %28, %29 : vector<8x256xf32>
    %c0_24 = arith.constant 0 : index
    %c0_25 = arith.constant 0 : index
    %31 = vector.load %arg6[%c0_24, %c0_25] : memref<1x256xf32, #tpu.memory_space<vmem>>, vector<1x256xf32>
    %32 = vector.broadcast %31 : vector<1x256xf32> to vector<8x256xf32>
    %33 = arith.mulf %15, %32 : vector<8x256xf32>
    %cst_26 = arith.constant dense<0.000000e+00> : vector<8xf32>
    %34 = vector.multi_reduction <add>, %33, %cst_26 [1] : vector<8x256xf32> to vector<8xf32>
    %35 = vector.shape_cast %34 : vector<8xf32> to vector<8x1xf32>
    %c0_27 = arith.constant 0 : index
    %c0_28 = arith.constant 0 : index
    %36 = vector.load %arg11[%c0_27, %c0_28] : memref<1x256xf32, #tpu.memory_space<vmem>>, vector<1x256xf32>
    %37 = vector.broadcast %36 : vector<1x256xf32> to vector<8x256xf32>
    %38 = arith.mulf %30, %37 : vector<8x256xf32>
    %cst_29 = arith.constant dense<0.000000e+00> : vector<8xf32>
    %39 = vector.multi_reduction <add>, %38, %cst_29 [1] : vector<8x256xf32> to vector<8xf32>
    %40 = vector.shape_cast %39 : vector<8xf32> to vector<8x1xf32>
    %41 = tpu.concatenate %35, %40 in 1 : vector<8x1xf32>, vector<8x1xf32> -> vector<8x2xf32>
    %c0_30 = arith.constant 0 : index
    %c0_31 = arith.constant 0 : index
    %42 = vector.load %arg12[%c0_30, %c0_31] : memref<1x2xf32, #tpu.memory_space<vmem>>, vector<1x2xf32>
    %43 = vector.broadcast %42 : vector<1x2xf32> to vector<8x2xf32>
    %44 = arith.addf %41, %43 : vector<8x2xf32>
    %c0_32 = arith.constant 0 : index
    %c0_33 = arith.constant 0 : index
    %45 = vector.load %arg13[%c0_32, %c0_33] : memref<8x2xf32, #tpu.memory_space<vmem>>, vector<8x2xf32>
    tpu.vector_store %arg13[%c0_32, %c0_33], %44 {strides = array<i32>} : memref<8x2xf32, #tpu.memory_space<vmem>>, vector<8x2xf32>,
    return
  }
  func.func @transform_0(%arg0: i32) -> (i32, i32) {
    %c0_i32 = arith.constant 0 : i32
    %c0_i32_0 = arith.constant 0 : i32
    return %arg0, %c0_i32 : i32, i32
  }
  func.func @transform_1(%arg0: i32) -> (i32, i32) {
    %c0_i32 = arith.constant 0 : i32
    %c0_i32_0 = arith.constant 0 : i32
    %c0_i32_1 = arith.constant 0 : i32
    return %c0_i32, %c0_i32_0 : i32, i32
  }
  func.func @transform_2(%arg0: i32) -> (i32, i32) {
    %c0_i32 = arith.constant 0 : i32
    %c0_i32_0 = arith.constant 0 : i32
    %c0_i32_1 = arith.constant 0 : i32
    return %c0_i32, %c0_i32_0 : i32, i32
  }
  func.func @transform_3(%arg0: i32) -> (i32, i32) {
    %c0_i32 = arith.constant 0 : i32
    %c0_i32_0 = arith.constant 0 : i32
    %c0_i32_1 = arith.constant 0 : i32
    return %c0_i32, %c0_i32_0 : i32, i32
  }
  func.func @transform_4(%arg0: i32) -> (i32, i32) {
    %c0_i32 = arith.constant 0 : i32
    %c0_i32_0 = arith.constant 0 : i32
    %c0_i32_1 = arith.constant 0 : i32
    return %c0_i32, %c0_i32_0 : i32, i32
  }
  func.func @transform_5(%arg0: i32) -> (i32, i32) {
    %c0_i32 = arith.constant 0 : i32
    %c0_i32_0 = arith.constant 0 : i32
    %c0_i32_1 = arith.constant 0 : i32
    return %c0_i32, %c0_i32_0 : i32, i32
  }
  func.func @transform_6(%arg0: i32) -> (i32, i32) {
    %c0_i32 = arith.constant 0 : i32
    %c0_i32_0 = arith.constant 0 : i32
    %c0_i32_1 = arith.constant 0 : i32
    return %c0_i32, %c0_i32_0 : i32, i32
  }
  func.func @transform_7(%arg0: i32) -> (i32, i32) {
    %c0_i32 = arith.constant 0 : i32
    %c0_i32_0 = arith.constant 0 : i32
    %c0_i32_1 = arith.constant 0 : i32
    return %c0_i32, %c0_i32_0 : i32, i32
  }
  func.func @transform_8(%arg0: i32) -> (i32, i32) {
    %c0_i32 = arith.constant 0 : i32
    %c0_i32_0 = arith.constant 0 : i32
    %c0_i32_1 = arith.constant 0 : i32
    return %c0_i32, %c0_i32_0 : i32, i32
  }
  func.func @transform_9(%arg0: i32) -> (i32, i32) {
    %c0_i32 = arith.constant 0 : i32
    %c0_i32_0 = arith.constant 0 : i32
    %c0_i32_1 = arith.constant 0 : i32
    return %c0_i32, %c0_i32_0 : i32, i32
  }
  func.func @transform_10(%arg0: i32) -> (i32, i32) {
    %c0_i32 = arith.constant 0 : i32
    %c0_i32_0 = arith.constant 0 : i32
    %c0_i32_1 = arith.constant 0 : i32
    return %c0_i32, %c0_i32_0 : i32, i32
  }
  func.func @transform_11(%arg0: i32) -> (i32, i32) {
    %c0_i32 = arith.constant 0 : i32
    %c0_i32_0 = arith.constant 0 : i32
    %c0_i32_1 = arith.constant 0 : i32
    return %c0_i32, %c0_i32_0 : i32, i32
  }
  func.func @transform_12(%arg0: i32) -> (i32, i32) {
    %c0_i32 = arith.constant 0 : i32
    %c0_i32_0 = arith.constant 0 : i32
    return %arg0, %c0_i32 : i32, i32
  }
}

</mosaic_0001>

<llo_original>
// kernel: tpu_custom_call.1
$region0: #{tpu_custom_call.1}
  #allocation0 [shape = 'u32[]', space=smem, size = 0x4, offset = 0x4, fixed_abs, tag = 'smem constant byte address 0x4 - core index']
  #allocation1 [shape = 'u32[144,128]{1,0:T(1,128)}', space=vmem, size = 0x12000, scoped, tag = 'internal scratch']
  %s0 = inlined_call_operand.hbm [shape: bf16[8,16], index: 0, kind: input, shape index: {}]
  %s1 = inlined_call_operand.hbm [shape: bf16[16,256], index: 1, kind: input, shape index: {}]
  %s2 = inlined_call_operand.vmem [shape: f32[1,256], index: 2, kind: input, shape index: {}]
  %s3 = inlined_call_operand.hbm [shape: bf16[256,256], index: 3, kind: input, shape index: {}]
  %s4 = inlined_call_operand.vmem [shape: f32[1,256], index: 4, kind: input, shape index: {}]
  %s5 = inlined_call_operand.vmem [shape: f32[1,256], index: 5, kind: input, shape index: {}]
  %s6 = inlined_call_operand.vmem [shape: bf16[16,256], index: 6, kind: input, shape index: {}]
  %s7 = inlined_call_operand.vmem [shape: f32[1,256], index: 7, kind: input, shape index: {}]
  %s8 = inlined_call_operand.hbm [shape: bf16[256,256], index: 8, kind: input, shape index: {}]
  %s9 = inlined_call_operand.vmem [shape: f32[1,256], index: 9, kind: input, shape index: {}]
  %s10 = inlined_call_operand.vmem [shape: f32[1,256], index: 10, kind: input, shape index: {}]
  %s11 = inlined_call_operand.vmem [shape: f32[1,2], index: 11, kind: input, shape index: {}]
  %s12 = inlined_call_operand.vmem [shape: f32[8,2], index: 12, kind: output, shape index: {}]
  %s13 = sld [smem:[#allocation0]]
  $region74: #{tpu_custom_call.1} parent=0
    _
  %s15 = ssub.s32 1, %s13
  %s16 = scalar_select 0, %s15, %s13
  $region1: #{tpu_custom_call.1} parent=0
    #allocation2 [shape = 'u8[2048]{0}', space=vmem, size = 0x800, scoped, tag = 'input window, operand 0, single buffered']
    #allocation3 [shape = 's32[1]{0}', space=sflag, size = 0x4, scoped, tag = 'scoped memory for tpu_custom_call.1']
    #allocation4 [shape = 'u8[8192]{0}', space=vmem, size = 0x2000, scoped, tag = 'input window, operand 1, single buffered']
    #allocation5 [shape = 's32[1]{0}', space=sflag, size = 0x4, scoped, tag = 'scoped memory for tpu_custom_call.1']
    #allocation6 [shape = 'u8[131072]{0}', space=vmem, size = 0x20000, scoped, tag = 'input window, operand 3, single buffered']
    #allocation7 [shape = 'u8[131072]{0}', space=vmem, size = 0x20000, scoped, tag = 'input window, operand 8, single buffered']
    #allocation8 [shape = 's32[1]{0}', space=sflag, size = 0x4, scoped, tag = 'scoped memory for tpu_custom_call.1']
    %17 = vsyncpa [#allocation3], 0
    %18 = vsyncpa [#allocation5], 0
    %19 = vsyncpa [#allocation8], 0
    // Predicated region
    $region2: #{tpu_custom_call.1} parent=1 // pred_check
      _
    $region3: #{tpu_custom_call.1} parent=1 // pred_check_branch
      %21 = sbr.rel (0) target = $region5
    $region4: #{tpu_custom_call.1} parent=1 // pred_region
      %s23 = ssub.s32 64, 64
      %24 = vsyncadd [#allocation3], %s23
      %s26 = sshll.u32 [#allocation2], 4
      %s27 = int_to_ptr.vmem [resolvable:$true] %s26
      %29 = dma.hbm_to_vmem [thread:$0]  %s0, 64, %s27, [#allocation3]
    $region5: #{tpu_custom_call.1} parent=1 // pred_fallthru
      _
    // Predicated region
    $region6: #{tpu_custom_call.1} parent=1 // pred_check
      _
    $region7: #{tpu_custom_call.1} parent=1 // pred_check_branch
      %31 = sbr.rel (0) target = $region9
    $region8: #{tpu_custom_call.1} parent=1 // pred_region
      %s33 = ssub.s32 256, 256
      %34 = vsyncadd [#allocation5], %s33
      %s35 = sshll.u32 [#allocation4], 4
      %s36 = int_to_ptr.vmem [resolvable:$true] %s35
      %41 = dma.hbm_to_vmem [thread:$0]  %s1, 256, %s36, [#allocation5], 128, 128, 8
    $region9: #{tpu_custom_call.1} parent=1 // pred_fallthru
      _
    // Predicated region
    $region10: #{tpu_custom_call.1} parent=1 // pred_check
      _
    $region11: #{tpu_custom_call.1} parent=1 // pred_check_branch
      %43 = sbr.rel (0) target = $region13
    $region12: #{tpu_custom_call.1} parent=1 // pred_region
      _
    $region13: #{tpu_custom_call.1} parent=1 // pred_fallthru
      _
    // Predicated region
    $region14: #{tpu_custom_call.1} parent=1 // pred_check
      _
    $region15: #{tpu_custom_call.1} parent=1 // pred_check_branch
      %45 = sbr.rel (0) target = $region17
    $region16: #{tpu_custom_call.1} parent=1 // pred_region
      %s47 = ssub.s32 4096, 4096
      %48 = vsyncadd [#allocation5], %s47
      %s49 = sshll.u32 [#allocation6], 4
      %s50 = int_to_ptr.vmem [resolvable:$true] %s49
      %55 = dma.hbm_to_vmem [thread:$0]  %s3, 4096, %s50, [#allocation5], 128, 128, 8
    $region17: #{tpu_custom_call.1} parent=1 // pred_fallthru
      _
    // Predicated region
    $region18: #{tpu_custom_call.1} parent=1 // pred_check
      _
    $region19: #{tpu_custom_call.1} parent=1 // pred_check_branch
      %57 = sbr.rel (0) target = $region21
    $region20: #{tpu_custom_call.1} parent=1 // pred_region
      _
    $region21: #{tpu_custom_call.1} parent=1 // pred_fallthru
      _
    // Predicated region
    $region22: #{tpu_custom_call.1} parent=1 // pred_check
      _
    $region23: #{tpu_custom_call.1} parent=1 // pred_check_branch
      %59 = sbr.rel (0) target = $region25
    $region24: #{tpu_custom_call.1} parent=1 // pred_region
      _
    $region25: #{tpu_custom_call.1} parent=1 // pred_fallthru
      _
    // Predicated region
    $region26: #{tpu_custom_call.1} parent=1 // pred_check
      _
    $region27: #{tpu_custom_call.1} parent=1 // pred_check_branch
      %61 = sbr.rel (0) target = $region29
    $region28: #{tpu_custom_call.1} parent=1 // pred_region
      _
    $region29: #{tpu_custom_call.1} parent=1 // pred_fallthru
      _
    // Predicated region
    $region30: #{tpu_custom_call.1} parent=1 // pred_check
      _
    $region31: #{tpu_custom_call.1} parent=1 // pred_check_branch
      %63 = sbr.rel (0) target = $region33
    $region32: #{tpu_custom_call.1} parent=1 // pred_region
      _
    $region33: #{tpu_custom_call.1} parent=1 // pred_fallthru
      _
    // Predicated region
    $region34: #{tpu_custom_call.1} parent=1 // pred_check
      _
    $region35: #{tpu_custom_call.1} parent=1 // pred_check_branch
      %65 = sbr.rel (0) target = $region37
    $region36: #{tpu_custom_call.1} parent=1 // pred_region
      %s67 = ssub.s32 4096, 4096
      %68 = vsyncadd [#allocation8], %s67
      %s69 = sshll.u32 [#allocation7], 4
      %s70 = int_to_ptr.vmem [resolvable:$true] %s69
      %75 = dma.hbm_to_vmem [thread:$0]  %s8, 4096, %s70, [#allocation8], 128, 128, 8
    $region37: #{tpu_custom_call.1} parent=1 // pred_fallthru
      _
    // Predicated region
    $region38: #{tpu_custom_call.1} parent=1 // pred_check
      _
    $region39: #{tpu_custom_call.1} parent=1 // pred_check_branch
      %77 = sbr.rel (0) target = $region41
    $region40: #{tpu_custom_call.1} parent=1 // pred_region
      _
    $region41: #{tpu_custom_call.1} parent=1 // pred_fallthru
      _
    // Predicated region
    $region42: #{tpu_custom_call.1} parent=1 // pred_check
      _
    $region43: #{tpu_custom_call.1} parent=1 // pred_check_branch
      %79 = sbr.rel (0) target = $region45
    $region44: #{tpu_custom_call.1} parent=1 // pred_region
      _
    $region45: #{tpu_custom_call.1} parent=1 // pred_fallthru
      _
    // Predicated region
    $region46: #{tpu_custom_call.1} parent=1 // pred_check
      _
    $region47: #{tpu_custom_call.1} parent=1 // pred_check_branch
      %81 = sbr.rel (0) target = $region49
    $region48: #{tpu_custom_call.1} parent=1 // pred_region
      _
    $region49: #{tpu_custom_call.1} parent=1 // pred_fallthru
      _
    // Predicated region
    $region50: #{tpu_custom_call.1} parent=1 // pred_check
      _
    $region51: #{tpu_custom_call.1} parent=1 // pred_check_branch
      %83 = sbr.rel (0) target = $region53
    $region52: #{tpu_custom_call.1} parent=1 // pred_region
      %84 = dma.done [#allocation3], 64
    $region53: #{tpu_custom_call.1} parent=1 // pred_fallthru
      _
    // Predicated region
    $region54: #{tpu_custom_call.1} parent=1 // pred_check
      _
    $region55: #{tpu_custom_call.1} parent=1 // pred_check_branch
      %86 = sbr.rel (0) target = $region57
    $region56: #{tpu_custom_call.1} parent=1 // pred_region
      %87 = dma.done [#allocation5], 256
    $region57: #{tpu_custom_call.1} parent=1 // pred_fallthru
      _
    // Predicated region
    $region58: #{tpu_custom_call.1} parent=1 // pred_check
      _
    $region59: #{tpu_custom_call.1} parent=1 // pred_check_branch
      %89 = sbr.rel (0) target = $region61
    $region60: #{tpu_custom_call.1} parent=1 // pred_region
      %90 = dma.done [#allocation5], 4096
    $region61: #{tpu_custom_call.1} parent=1 // pred_fallthru
      _
    // Predicated region
    $region62: #{tpu_custom_call.1} parent=1 // pred_check
      _
    $region63: #{tpu_custom_call.1} parent=1 // pred_check_branch
      %92 = sbr.rel (0) target = $region65
    $region64: #{tpu_custom_call.1} parent=1 // pred_region
      %93 = dma.done [#allocation8], 4096
    $region65: #{tpu_custom_call.1} parent=1 // pred_fallthru
      _
    %v95 = vld [vmem:[#allocation2] sm:$0xf]
    %v96 = vld [vmem:[#allocation4] sm:$0xff]
    %v97 = vld [vmem:[#allocation4 + $0x8] sm:$0xff]
    %v98 = vld [vmem:[%s2] sm:$0x3]
    %v100 = vlaneseq
    %v101 = vshrl.u32 %v100, 7
    %v102 = vsub.s32 0, %v101
    %v103 = vrot.slane %v98, %v102
    %v104 = vlaneseq
    %v105 = vshrl.u32 %v104, 7
    %v106 = vsub.s32 1, %v105
    %v107 = vrot.slane %v98, %v106
    %v112 = vunpack.c.l.b16 %v96
    %v113 = vunpack.c.h.b16 %v96
    %v114 = vunpack.c.l.b16 %v97
    %v115 = vunpack.c.h.b16 %v97
    %v116 = vpack.c.b16 %v114, %v112
    %v117 = vpack.c.b16 %v115, %v113
    %vm120 = vcmask 130048
    %v122 = vsel %vm120, %v95, 0
    %124 = vmatprep.subr.bf16.mxu0 %v117
    %125 = vmatpush1.bf16.msra.mxu0 %v116
    %126 = vmatprep.subr.bf16.mxu0 0
    %127 = vmatpush1.bf16.msra.mxu0 0
    %128 = vmatprep.subr.bf16.mxu0 0
    %129 = vmatpush1.bf16.msra.mxu0 0
    %130 = vmatprep.subr.bf16.mxu0 0
    %131 = vmatpush1.bf16.msra.mxu0 0
    %132 = vmatprep.subr.bf16.mxu0 0
    %133 = vmatpush1.bf16.msra.mxu0 0
    %134 = vmatprep.subr.bf16.mxu0 0
    %135 = vmatpush1.bf16.msra.mxu0 0
    %136 = vmatprep.subr.bf16.mxu0 0
    %137 = vmatpush1.bf16.msra.mxu0 0
    %138 = vmatprep.subr.bf16.mxu0 0
    %139 = vmatpush1.bf16.msra.mxu0 0
    %140 = vmatprep.subr.bf16.mxu0 0
    %141 = vmatpush1.bf16.msra.mxu0 0
    %142 = vmatprep.subr.bf16.mxu0 0
    %143 = vmatpush1.bf16.msra.mxu0 0
    %144 = vmatprep.subr.bf16.mxu0 0
    %145 = vmatpush1.bf16.msra.mxu0 0
    %146 = vmatprep.subr.bf16.mxu0 0
    %147 = vmatpush1.bf16.msra.mxu0 0
    %148 = vmatprep.subr.bf16.mxu0 0
    %149 = vmatpush1.bf16.msra.mxu0 0
    %150 = vmatprep.subr.bf16.mxu0 0
    %151 = vmatpush1.bf16.msra.mxu0 0
    %152 = vmatprep.subr.bf16.mxu0 0
    %153 = vmatpush1.bf16.msra.mxu0 0
    %154 = vmatprep.subr.bf16.mxu0 0
    %155 = vmatpush1.bf16.msra.mxu0 0
    %156 = vmatprep.mubr.bf16.mxu0 0
    %157 = vmatmul.mubr.bf16.gmra.mrb[0].mxu0 %v122
    %v158 = vpop.f32.mrb[0].mxu0
    %v159 = vadd.f32 %v103, %v158
    %v160 = vpop.f32.mrb[0].mxu0
    %v161 = vadd.f32 %v107, %v160
    %v162 = vpop.f32.mrb[0].mxu0
    %v163 = vpop.f32.mrb[0].mxu0
    %164 = vdwg.mxu0
    %v165 = vmax.f32 %v159, 0.0
    %v166 = vmax.f32 %v161, 0.0
    %v167 = vpack.c.bf16 %v165, %v165
    %v168 = vpack.c.bf16 %v166, %v166
    %v169 = vld [vmem:[#allocation6] sm:$0xff]
    %v170 = vld [vmem:[#allocation6 + $0x8] sm:$0xff]
    %v171 = vld [vmem:[#allocation6 + $0x10] sm:$0xff]
    %v172 = vld [vmem:[#allocation6 + $0x18] sm:$0xff]
    %v173 = vld [vmem:[#allocation6 + $0x20] sm:$0xff]
    %v174 = vld [vmem:[#allocation6 + $0x28] sm:$0xff]
    %v175 = vld [vmem:[#allocation6 + $0x30] sm:$0xff]
    %v176 = vld [vmem:[#allocation6 + $0x38] sm:$0xff]
    %v177 = vld [vmem:[#allocation6 + $0x40] sm:$0xff]
    %v178 = vld [vmem:[#allocation6 + $0x48] sm:$0xff]
    %v179 = vld [vmem:[#allocation6 + $0x50] sm:$0xff]
    %v180 = vld [vmem:[#allocation6 + $0x58] sm:$0xff]
    %v181 = vld [vmem:[#allocation6 + $0x60] sm:$0xff]
    %v182 = vld [vmem:[#allocation6 + $0x68] sm:$0xff]
    %v183 = vld [vmem:[#allocation6 + $0x70] sm:$0xff]
    %v184 = vld [vmem:[#allocation6 + $0x78] sm:$0xff]
    %v185 = vld [vmem:[#allocation6 + $0x80] sm:$0xff]
    %v186 = vld [vmem:[#allocation6 + $0x88] sm:$0xff]
    %v187 = vld [vmem:[#allocation6 + $0x90] sm:$0xff]
    %v188 = vld [vmem:[#allocation6 + $0x98] sm:$0xff]
    %v189 = vld [vmem:[#allocation6 + $0xa0] sm:$0xff]
    %v190 = vld [vmem:[#allocation6 + $0xa8] sm:$0xff]
    %v191 = vld [vmem:[#allocation6 + $0xb0] sm:$0xff]
    %v192 = vld [vmem:[#allocation6 + $0xb8] sm:$0xff]
    %v193 = vld [vmem:[#allocation6 + $0xc0] sm:$0xff]
    %v194 = vld [vmem:[#allocation6 + $0xc8] sm:$0xff]
    %v195 = vld [vmem:[#allocation6 + $0xd0] sm:$0xff]
    %v196 = vld [vmem:[#allocation6 + $0xd8] sm:$0xff]
    %v197 = vld [vmem:[#allocation6 + $0xe0] sm:$0xff]
    %v198 = vld [vmem:[#allocation6 + $0xe8] sm:$0xff]
    %v199 = vld [vmem:[#allocation6 + $0xf0] sm:$0xff]
    %v200 = vld [vmem:[#allocation6 + $0xf8] sm:$0xff]
    %v201 = vld [vmem:[%s4] sm:$0x3]
    %v203 = vlaneseq
    %v204 = vshrl.u32 %v203, 7
    %v205 = vsub.s32 0, %v204
    %v206 = vrot.slane %v201, %v205
    %v207 = vlaneseq
    %v208 = vshrl.u32 %v207, 7
    %v209 = vsub.s32 1, %v208
    %v210 = vrot.slane %v201, %v209
    %v245 = vunpack.c.l.b16 %v169
    %v246 = vunpack.c.h.b16 %v169
    %v247 = vunpack.c.l.b16 %v170
    %v248 = vunpack.c.h.b16 %v170
    %v249 = vunpack.c.l.b16 %v171
    %v250 = vunpack.c.h.b16 %v171
    %v251 = vunpack.c.l.b16 %v172
    %v252 = vunpack.c.h.b16 %v172
    %v253 = vunpack.c.l.b16 %v173
    %v254 = vunpack.c.h.b16 %v173
    %v255 = vunpack.c.l.b16 %v174
    %v256 = vunpack.c.h.b16 %v174
    %v257 = vunpack.c.l.b16 %v175
    %v258 = vunpack.c.h.b16 %v175
    %v259 = vunpack.c.l.b16 %v176
    %v260 = vunpack.c.h.b16 %v176
    %v261 = vunpack.c.l.b16 %v177
    %v262 = vunpack.c.h.b16 %v177
    %v263 = vunpack.c.l.b16 %v178
    %v264 = vunpack.c.h.b16 %v178
    %v265 = vunpack.c.l.b16 %v179
    %v266 = vunpack.c.h.b16 %v179
    %v267 = vunpack.c.l.b16 %v180
    %v268 = vunpack.c.h.b16 %v180
    %v269 = vunpack.c.l.b16 %v181
    %v270 = vunpack.c.h.b16 %v181
    %v271 = vunpack.c.l.b16 %v182
    %v272 = vunpack.c.h.b16 %v182
    %v273 = vunpack.c.l.b16 %v183
    %v274 = vunpack.c.h.b16 %v183
    %v275 = vunpack.c.l.b16 %v184
    %v276 = vunpack.c.h.b16 %v184
    %v277 = vunpack.c.l.b16 %v185
    %v278 = vunpack.c.h.b16 %v185
    %v279 = vunpack.c.l.b16 %v186
    %v280 = vunpack.c.h.b16 %v186
    %v281 = vunpack.c.l.b16 %v187
    %v282 = vunpack.c.h.b16 %v187
    %v283 = vunpack.c.l.b16 %v188
    %v284 = vunpack.c.h.b16 %v188
    %v285 = vunpack.c.l.b16 %v189
    %v286 = vunpack.c.h.b16 %v189
    %v287 = vunpack.c.l.b16 %v190
    %v288 = vunpack.c.h.b16 %v190
    %v289 = vunpack.c.l.b16 %v191
    %v290 = vunpack.c.h.b16 %v191
    %v291 = vunpack.c.l.b16 %v192
    %v292 = vunpack.c.h.b16 %v192
    %v293 = vunpack.c.l.b16 %v193
    %v294 = vunpack.c.h.b16 %v193
    %v295 = vunpack.c.l.b16 %v194
    %v296 = vunpack.c.h.b16 %v194
    %v297 = vunpack.c.l.b16 %v195
    %v298 = vunpack.c.h.b16 %v195
    %v299 = vunpack.c.l.b16 %v196
    %v300 = vunpack.c.h.b16 %v196
    %v301 = vunpack.c.l.b16 %v197
    %v302 = vunpack.c.h.b16 %v197
    %v303 = vunpack.c.l.b16 %v198
    %v304 = vunpack.c.h.b16 %v198
    %v305 = vunpack.c.l.b16 %v199
    %v306 = vunpack.c.h.b16 %v199
    %v307 = vunpack.c.l.b16 %v200
    %v308 = vunpack.c.h.b16 %v200
    %v309 = vpack.c.b16 %v247, %v245
    %v310 = vpack.c.b16 %v248, %v246
    %v311 = vpack.c.b16 %v251, %v249
    %v312 = vpack.c.b16 %v252, %v250
    %v313 = vpack.c.b16 %v255, %v253
    %v314 = vpack.c.b16 %v256, %v254
    %v315 = vpack.c.b16 %v259, %v257
    %v316 = vpack.c.b16 %v260, %v258
    %v317 = vpack.c.b16 %v263, %v261
    %v318 = vpack.c.b16 %v264, %v262
    %v319 = vpack.c.b16 %v267, %v265
    %v320 = vpack.c.b16 %v268, %v266
    %v321 = vpack.c.b16 %v271, %v269
    %v322 = vpack.c.b16 %v272, %v270
    %v323 = vpack.c.b16 %v275, %v273
    %v324 = vpack.c.b16 %v276, %v274
    %v325 = vpack.c.b16 %v279, %v277
    %v326 = vpack.c.b16 %v280, %v278
    %v327 = vpack.c.b16 %v283, %v281
    %v328 = vpack.c.b16 %v284, %v282
    %v329 = vpack.c.b16 %v287, %v285
    %v330 = vpack.c.b16 %v288, %v286
    %v331 = vpack.c.b16 %v291, %v289
    %v332 = vpack.c.b16 %v292, %v290
    %v333 = vpack.c.b16 %v295, %v293
    %v334 = vpack.c.b16 %v296, %v294
    %v335 = vpack.c.b16 %v299, %v297
    %v336 = vpack.c.b16 %v300, %v298
    %v337 = vpack.c.b16 %v303, %v301
    %v338 = vpack.c.b16 %v304, %v302
    %v339 = vpack.c.b16 %v307, %v305
    %v340 = vpack.c.b16 %v308, %v306
    %373 = vmatprep.subr.bf16.mxu0 %v310
    %374 = vmatpush1.bf16.msra.mxu0 %v309
    %375 = vmatprep.subr.bf16.mxu0 %v312
    %376 = vmatpush1.bf16.msra.mxu0 %v311
    %377 = vmatprep.subr.bf16.mxu0 %v314
    %378 = vmatpush1.bf16.msra.mxu0 %v313
    %379 = vmatprep.subr.bf16.mxu0 %v316
    %380 = vmatpush1.bf16.msra.mxu0 %v315
    %381 = vmatprep.subr.bf16.mxu0 %v318
    %382 = vmatpush1.bf16.msra.mxu0 %v317
    %383 = vmatprep.subr.bf16.mxu0 %v320
    %384 = vmatpush1.bf16.msra.mxu0 %v319
    %385 = vmatprep.subr.bf16.mxu0 %v322
    %386 = vmatpush1.bf16.msra.mxu0 %v321
    %387 = vmatprep.subr.bf16.mxu0 %v324
    %388 = vmatpush1.bf16.msra.mxu0 %v323
    %389 = vmatprep.subr.bf16.mxu0 %v326
    %390 = vmatpush1.bf16.msra.mxu0 %v325
    %391 = vmatprep.subr.bf16.mxu0 %v328
    %392 = vmatpush1.bf16.msra.mxu0 %v327
    %393 = vmatprep.subr.bf16.mxu0 %v330
    %394 = vmatpush1.bf16.msra.mxu0 %v329
    %395 = vmatprep.subr.bf16.mxu0 %v332
    %396 = vmatpush1.bf16.msra.mxu0 %v331
    %397 = vmatprep.subr.bf16.mxu0 %v334
    %398 = vmatpush1.bf16.msra.mxu0 %v333
    %399 = vmatprep.subr.bf16.mxu0 %v336
    %400 = vmatpush1.bf16.msra.mxu0 %v335
    %401 = vmatprep.subr.bf16.mxu0 %v338
    %402 = vmatpush1.bf16.msra.mxu0 %v337
    %403 = vmatprep.subr.bf16.mxu0 %v340
    %404 = vmatpush1.bf16.msra.mxu0 %v339
    %405 = vmatprep.mubr.bf16.mxu0 %v168
    %406 = vmatmul.mubr.bf16.gmra.mrb[0].mxu0 %v167
    %v407 = vpop.f32.mrb[0].mxu0
    %v408 = vadd.f32 %v206, %v407
    %v409 = vpop.f32.mrb[0].mxu0
    %v410 = vadd.f32 %v210, %v409
    %v411 = vpop.f32.mrb[0].mxu0
    %v412 = vpop.f32.mrb[0].mxu0
    %413 = vdwg.mxu0
    %v414 = vmax.f32 %v408, 0.0
    %v415 = vmax.f32 %v410, 0.0
    %v416 = vld [vmem:[%s6] sm:$0xff]
    %v417 = vld [vmem:[%s6 + $0x8] sm:$0xff]
    %v418 = vld [vmem:[%s7] sm:$0x3]
    %v420 = vlaneseq
    %v421 = vshrl.u32 %v420, 7
    %v422 = vsub.s32 0, %v421
    %v423 = vrot.slane %v418, %v422
    %v424 = vlaneseq
    %v425 = vshrl.u32 %v424, 7
    %v426 = vsub.s32 1, %v425
    %v427 = vrot.slane %v418, %v426
    %v432 = vunpack.c.l.b16 %v416
    %v433 = vunpack.c.h.b16 %v416
    %v434 = vunpack.c.l.b16 %v417
    %v435 = vunpack.c.h.b16 %v417
    %v436 = vpack.c.b16 %v434, %v432
    %v437 = vpack.c.b16 %v435, %v433
    %440 = vmatprep.subr.bf16.mxu0 %v437
    %441 = vmatpush1.bf16.msra.mxu0 %v436
    %442 = vmatprep.subr.bf16.mxu0 0
    %443 = vmatpush1.bf16.msra.mxu0 0
    %444 = vmatprep.subr.bf16.mxu0 0
    %445 = vmatpush1.bf16.msra.mxu0 0
    %446 = vmatprep.subr.bf16.mxu0 0
    %447 = vmatpush1.bf16.msra.mxu0 0
    %448 = vmatprep.subr.bf16.mxu0 0
    %449 = vmatpush1.bf16.msra.mxu0 0
    %450 = vmatprep.subr.bf16.mxu0 0
    %451 = vmatpush1.bf16.msra.mxu0 0
    %452 = vmatprep.subr.bf16.mxu0 0
    %453 = vmatpush1.bf16.msra.mxu0 0
    %454 = vmatprep.subr.bf16.mxu0 0
    %455 = vmatpush1.bf16.msra.mxu0 0
    %456 = vmatprep.subr.bf16.mxu0 0
    %457 = vmatpush1.bf16.msra.mxu0 0
    %458 = vmatprep.subr.bf16.mxu0 0
    %459 = vmatpush1.bf16.msra.mxu0 0
    %460 = vmatprep.subr.bf16.mxu0 0
    %461 = vmatpush1.bf16.msra.mxu0 0
    %462 = vmatprep.subr.bf16.mxu0 0
    %463 = vmatpush1.bf16.msra.mxu0 0
    %464 = vmatprep.subr.bf16.mxu0 0
    %465 = vmatpush1.bf16.msra.mxu0 0
    %466 = vmatprep.subr.bf16.mxu0 0
    %467 = vmatpush1.bf16.msra.mxu0 0
    %468 = vmatprep.subr.bf16.mxu0 0
    %469 = vmatpush1.bf16.msra.mxu0 0
    %470 = vmatprep.subr.bf16.mxu0 0
    %471 = vmatpush1.bf16.msra.mxu0 0
    %472 = vmatprep.mubr.bf16.mxu0 0
    %473 = vmatmul.mubr.bf16.gmra.mrb[0].mxu0 %v122
    %v474 = vpop.f32.mrb[0].mxu0
    %v475 = vadd.f32 %v423, %v474
    %v476 = vpop.f32.mrb[0].mxu0
    %v477 = vadd.f32 %v427, %v476
    %v478 = vpop.f32.mrb[0].mxu0
    %v479 = vpop.f32.mrb[0].mxu0
    %480 = vdwg.mxu0
    %v481 = vmax.f32 %v475, 0.0
    %v482 = vmax.f32 %v477, 0.0
    %v483 = vpack.c.bf16 %v481, %v481
    %v484 = vpack.c.bf16 %v482, %v482
    %v485 = vld [vmem:[#allocation7] sm:$0xff]
    %v486 = vld [vmem:[#allocation7 + $0x8] sm:$0xff]
    %v487 = vld [vmem:[#allocation7 + $0x10] sm:$0xff]
    %v488 = vld [vmem:[#allocation7 + $0x18] sm:$0xff]
    %v489 = vld [vmem:[#allocation7 + $0x20] sm:$0xff]
    %v490 = vld [vmem:[#allocation7 + $0x28] sm:$0xff]
    %v491 = vld [vmem:[#allocation7 + $0x30] sm:$0xff]
    %v492 = vld [vmem:[#allocation7 + $0x38] sm:$0xff]
    %v493 = vld [vmem:[#allocation7 + $0x40] sm:$0xff]
    %v494 = vld [vmem:[#allocation7 + $0x48] sm:$0xff]
    %v495 = vld [vmem:[#allocation7 + $0x50] sm:$0xff]
    %v496 = vld [vmem:[#allocation7 + $0x58] sm:$0xff]
    %v497 = vld [vmem:[#allocation7 + $0x60] sm:$0xff]
    %v498 = vld [vmem:[#allocation7 + $0x68] sm:$0xff]
    %v499 = vld [vmem:[#allocation7 + $0x70] sm:$0xff]
    %v500 = vld [vmem:[#allocation7 + $0x78] sm:$0xff]
    %v501 = vld [vmem:[#allocation7 + $0x80] sm:$0xff]
    %v502 = vld [vmem:[#allocation7 + $0x88] sm:$0xff]
    %v503 = vld [vmem:[#allocation7 + $0x90] sm:$0xff]
    %v504 = vld [vmem:[#allocation7 + $0x98] sm:$0xff]
    %v505 = vld [vmem:[#allocation7 + $0xa0] sm:$0xff]
    %v506 = vld [vmem:[#allocation7 + $0xa8] sm:$0xff]
    %v507 = vld [vmem:[#allocation7 + $0xb0] sm:$0xff]
    %v508 = vld [vmem:[#allocation7 + $0xb8] sm:$0xff]
    %v509 = vld [vmem:[#allocation7 + $0xc0] sm:$0xff]
    %v510 = vld [vmem:[#allocation7 + $0xc8] sm:$0xff]
    %v511 = vld [vmem:[#allocation7 + $0xd0] sm:$0xff]
    %v512 = vld [vmem:[#allocation7 + $0xd8] sm:$0xff]
    %v513 = vld [vmem:[#allocation7 + $0xe0] sm:$0xff]
    %v514 = vld [vmem:[#allocation7 + $0xe8] sm:$0xff]
    %v515 = vld [vmem:[#allocation7 + $0xf0] sm:$0xff]
    %v516 = vld [vmem:[#allocation7 + $0xf8] sm:$0xff]
    %v517 = vld [vmem:[%s9] sm:$0x3]
    %v519 = vlaneseq
    %v520 = vshrl.u32 %v519, 7
    %v521 = vsub.s32 0, %v520
    %v522 = vrot.slane %v517, %v521
    %v523 = vlaneseq
    %v524 = vshrl.u32 %v523, 7
    %v525 = vsub.s32 1, %v524
    %v526 = vrot.slane %v517, %v525
    %v561 = vunpack.c.l.b16 %v485
    %v562 = vunpack.c.h.b16 %v485
    %v563 = vunpack.c.l.b16 %v486
    %v564 = vunpack.c.h.b16 %v486
    %v565 = vunpack.c.l.b16 %v487
    %v566 = vunpack.c.h.b16 %v487
    %v567 = vunpack.c.l.b16 %v488
    %v568 = vunpack.c.h.b16 %v488
    %v569 = vunpack.c.l.b16 %v489
    %v570 = vunpack.c.h.b16 %v489
    %v571 = vunpack.c.l.b16 %v490
    %v572 = vunpack.c.h.b16 %v490
    %v573 = vunpack.c.l.b16 %v491
    %v574 = vunpack.c.h.b16 %v491
    %v575 = vunpack.c.l.b16 %v492
    %v576 = vunpack.c.h.b16 %v492
    %v577 = vunpack.c.l.b16 %v493
    %v578 = vunpack.c.h.b16 %v493
    %v579 = vunpack.c.l.b16 %v494
    %v580 = vunpack.c.h.b16 %v494
    %v581 = vunpack.c.l.b16 %v495
    %v582 = vunpack.c.h.b16 %v495
    %v583 = vunpack.c.l.b16 %v496
    %v584 = vunpack.c.h.b16 %v496
    %v585 = vunpack.c.l.b16 %v497
    %v586 = vunpack.c.h.b16 %v497
    %v587 = vunpack.c.l.b16 %v498
    %v588 = vunpack.c.h.b16 %v498
    %v589 = vunpack.c.l.b16 %v499
    %v590 = vunpack.c.h.b16 %v499
    %v591 = vunpack.c.l.b16 %v500
    %v592 = vunpack.c.h.b16 %v500
    %v593 = vunpack.c.l.b16 %v501
    %v594 = vunpack.c.h.b16 %v501
    %v595 = vunpack.c.l.b16 %v502
    %v596 = vunpack.c.h.b16 %v502
    %v597 = vunpack.c.l.b16 %v503
    %v598 = vunpack.c.h.b16 %v503
    %v599 = vunpack.c.l.b16 %v504
    %v600 = vunpack.c.h.b16 %v504
    %v601 = vunpack.c.l.b16 %v505
    %v602 = vunpack.c.h.b16 %v505
    %v603 = vunpack.c.l.b16 %v506
    %v604 = vunpack.c.h.b16 %v506
    %v605 = vunpack.c.l.b16 %v507
    %v606 = vunpack.c.h.b16 %v507
    %v607 = vunpack.c.l.b16 %v508
    %v608 = vunpack.c.h.b16 %v508
    %v609 = vunpack.c.l.b16 %v509
    %v610 = vunpack.c.h.b16 %v509
    %v611 = vunpack.c.l.b16 %v510
    %v612 = vunpack.c.h.b16 %v510
    %v613 = vunpack.c.l.b16 %v511
    %v614 = vunpack.c.h.b16 %v511
    %v615 = vunpack.c.l.b16 %v512
    %v616 = vunpack.c.h.b16 %v512
    %v617 = vunpack.c.l.b16 %v513
    %v618 = vunpack.c.h.b16 %v513
    %v619 = vunpack.c.l.b16 %v514
    %v620 = vunpack.c.h.b16 %v514
    %v621 = vunpack.c.l.b16 %v515
    %v622 = vunpack.c.h.b16 %v515
    %v623 = vunpack.c.l.b16 %v516
    %v624 = vunpack.c.h.b16 %v516
    %v625 = vpack.c.b16 %v563, %v561
    %v626 = vpack.c.b16 %v564, %v562
    %v627 = vpack.c.b16 %v567, %v565
    %v628 = vpack.c.b16 %v568, %v566
    %v629 = vpack.c.b16 %v571, %v569
    %v630 = vpack.c.b16 %v572, %v570
    %v631 = vpack.c.b16 %v575, %v573
    %v632 = vpack.c.b16 %v576, %v574
    %v633 = vpack.c.b16 %v579, %v577
    %v634 = vpack.c.b16 %v580, %v578
    %v635 = vpack.c.b16 %v583, %v581
    %v636 = vpack.c.b16 %v584, %v582
    %v637 = vpack.c.b16 %v587, %v585
    %v638 = vpack.c.b16 %v588, %v586
    %v639 = vpack.c.b16 %v591, %v589
    %v640 = vpack.c.b16 %v592, %v590
    %v641 = vpack.c.b16 %v595, %v593
    %v642 = vpack.c.b16 %v596, %v594
    %v643 = vpack.c.b16 %v599, %v597
    %v644 = vpack.c.b16 %v600, %v598
    %v645 = vpack.c.b16 %v603, %v601
    %v646 = vpack.c.b16 %v604, %v602
    %v647 = vpack.c.b16 %v607, %v605
    %v648 = vpack.c.b16 %v608, %v606
    %v649 = vpack.c.b16 %v611, %v609
    %v650 = vpack.c.b16 %v612, %v610
    %v651 = vpack.c.b16 %v615, %v613
    %v652 = vpack.c.b16 %v616, %v614
    %v653 = vpack.c.b16 %v619, %v617
    %v654 = vpack.c.b16 %v620, %v618
    %v655 = vpack.c.b16 %v623, %v621
    %v656 = vpack.c.b16 %v624, %v622
    %689 = vmatprep.subr.bf16.mxu0 %v626
    %690 = vmatpush1.bf16.msra.mxu0 %v625
    %691 = vmatprep.subr.bf16.mxu0 %v628
    %692 = vmatpush1.bf16.msra.mxu0 %v627
    %693 = vmatprep.subr.bf16.mxu0 %v630
    %694 = vmatpush1.bf16.msra.mxu0 %v629
    %695 = vmatprep.subr.bf16.mxu0 %v632
    %696 = vmatpush1.bf16.msra.mxu0 %v631
    %697 = vmatprep.subr.bf16.mxu0 %v634
    %698 = vmatpush1.bf16.msra.mxu0 %v633
    %699 = vmatprep.subr.bf16.mxu0 %v636
    %700 = vmatpush1.bf16.msra.mxu0 %v635
    %701 = vmatprep.subr.bf16.mxu0 %v638
    %702 = vmatpush1.bf16.msra.mxu0 %v637
    %703 = vmatprep.subr.bf16.mxu0 %v640
    %704 = vmatpush1.bf16.msra.mxu0 %v639
    %705 = vmatprep.subr.bf16.mxu0 %v642
    %706 = vmatpush1.bf16.msra.mxu0 %v641
    %707 = vmatprep.subr.bf16.mxu0 %v644
    %708 = vmatpush1.bf16.msra.mxu0 %v643
    %709 = vmatprep.subr.bf16.mxu0 %v646
    %710 = vmatpush1.bf16.msra.mxu0 %v645
    %711 = vmatprep.subr.bf16.mxu0 %v648
    %712 = vmatpush1.bf16.msra.mxu0 %v647
    %713 = vmatprep.subr.bf16.mxu0 %v650
    %714 = vmatpush1.bf16.msra.mxu0 %v649
    %715 = vmatprep.subr.bf16.mxu0 %v652
    %716 = vmatpush1.bf16.msra.mxu0 %v651
    %717 = vmatprep.subr.bf16.mxu0 %v654
    %718 = vmatpush1.bf16.msra.mxu0 %v653
    %719 = vmatprep.subr.bf16.mxu0 %v656
    %720 = vmatpush1.bf16.msra.mxu0 %v655
    %721 = vmatprep.mubr.bf16.mxu0 %v484
    %722 = vmatmul.mubr.bf16.gmra.mrb[0].mxu0 %v483
    %v723 = vpop.f32.mrb[0].mxu0
    %v724 = vadd.f32 %v522, %v723
    %v725 = vpop.f32.mrb[0].mxu0
    %v726 = vadd.f32 %v526, %v725
    %v727 = vpop.f32.mrb[0].mxu0
    %v728 = vpop.f32.mrb[0].mxu0
    %729 = vdwg.mxu0
    %v730 = vmax.f32 %v724, 0.0
    %v731 = vmax.f32 %v726, 0.0
    %v732 = vld [vmem:[%s5] sm:$0x3]
    %v734 = vlaneseq
    %v735 = vshrl.u32 %v734, 7
    %v736 = vsub.s32 0, %v735
    %v737 = vrot.slane %v732, %v736
    %v738 = vlaneseq
    %v739 = vshrl.u32 %v738, 7
    %v740 = vsub.s32 1, %v739
    %v741 = vrot.slane %v732, %v740
    %v744 = vmul.f32 %v414, %v737
    %v745 = vmul.f32 %v415, %v741
    %v746 = vadd.f32 %v744, %v745
    %747 = vadd.xlane.f32.xlu0 %v746
    %v748 = vpop.xlane.xlu0 %747
    %v749 = vld [vmem:[%s10] sm:$0x3]
    %v751 = vlaneseq
    %v752 = vshrl.u32 %v751, 7
    %v753 = vsub.s32 0, %v752
    %v754 = vrot.slane %v749, %v753
    %v755 = vlaneseq
    %v756 = vshrl.u32 %v755, 7
    %v757 = vsub.s32 1, %v756
    %v758 = vrot.slane %v749, %v757
    %v761 = vmul.f32 %v730, %v754
    %v762 = vmul.f32 %v731, %v758
    %v763 = vadd.f32 %v761, %v762
    %764 = vadd.xlane.f32.xlu0 %v763
    %v765 = vpop.xlane.xlu0 %764
    %vm766 = vcmask 7168
    %v767 = vsel %vm766, %v748, %v765
    %v768 = vld [vmem:[%s11] sm:$0x1]
    %v770 = vlaneseq
    %v771 = vshrl.u32 %v770, 7
    %v772 = vsub.s32 0, %v771
    %v773 = vrot.slane %v768, %v772
    %v775 = vadd.f32 %v767, %v773
    %vm776 = vcmask 15360
    %777 = vst.msk [vmem:[%s12] sm:$0xff] %vm776, %v775
    // Predicated region
    $region66: #{tpu_custom_call.1} parent=1 // pred_check
      _
    $region67: #{tpu_custom_call.1} parent=1 // pred_check_branch
      %779 = sbr.rel (0) target = $region69
    $region68: #{tpu_custom_call.1} parent=1 // pred_region
      _
    $region69: #{tpu_custom_call.1} parent=1 // pred_fallthru
      _
    // Predicated region
    $region70: #{tpu_custom_call.1} parent=1 // pred_check
      _
    $region71: #{tpu_custom_call.1} parent=1 // pred_check_branch
      %781 = sbr.rel (0) target = $region73
    $region72: #{tpu_custom_call.1} parent=1 // pred_region
      _
    $region73: #{tpu_custom_call.1} parent=1 // pred_fallthru
      _
    %782 = vsyncpa [#allocation3], 1
    %783 = vsyncpa [#allocation5], 1
    %784 = vsyncpa [#allocation8], 1

</llo_original>
